<compile_context>
chip_gen: v7x
topology: tpu7x:2x2x1
jax: 0.10.0
libtpu: 0.0.40
codegen_flags: <defaults>
</compile_context>

<pallas_src>
import functools

import jax
import jax.numpy as jnp
import numpy as np
from jax.experimental import pallas as pl
from jax.experimental.pallas import tpu as pltpu

BN_EPS = 1e-5


def _round_up(x, m):
    return ((x + m - 1) // m) * m


# ---------------------------------------------------------------------------
# Fused single-kernel path (whole network in VMEM, no grid)
# ---------------------------------------------------------------------------
def _fused_kernel(x_ref, *refs, n_layers, n_rows_valid, n):
    """Input stats + all (BN -> ReLU -> Linear [-> ReLU]) layers in one kernel."""
    out_ref = refs[2 * n_layers]
    h = x_ref[...]                                      # (Np, F0p) f32, padded rows/lanes zero
    inv_n = 1.0 / float(n)
    for l in range(n_layers):
        w_ref, b_ref = refs[2 * l], refs[2 * l + 1]
        # Global (training-mode) BatchNorm statistics; padded rows are exactly zero.
        mu = jnp.sum(h, axis=0, keepdims=True) * inv_n
        ex2 = jnp.sum(h * h, axis=0, keepdims=True) * inv_n
        var = jnp.maximum(ex2 - mu * mu, 0.0)
        inv = jax.lax.rsqrt(var + BN_EPS)
        g = jnp.maximum((h - mu) * inv, 0.0)            # BN (affine=False) -> ReLU
        y = jnp.dot(g.astype(jnp.bfloat16), w_ref[...],
                    preferred_element_type=jnp.float32) + b_ref[...]
        if l != n_layers - 1:
            y = jnp.maximum(y, 0.0)                     # ReLU (Dropout p=0 == identity)
            if n_rows_valid is not None:
                rows = jax.lax.broadcasted_iota(jnp.int32, y.shape, 0)
                y = jnp.where(rows < n_rows_valid, y, 0.0)
        h = y
    out_ref[...] = h


def _fused_forward(xp, prepped, n, n_rows_valid):
    n_layers = len(prepped)
    np_rows = xp.shape[0]
    fout = prepped[-1][0].shape[1]
    args = [xp]
    for wp, bp in prepped:
        args += [wp, bp]
    kernel = functools.partial(_fused_kernel, n_layers=n_layers,
                               n_rows_valid=n_rows_valid, n=n)
    flops = 2 * sum(np_rows * wp.shape[0] * wp.shape[1] for wp, _ in prepped)
    byt = sum(int(a.size) * a.dtype.itemsize for a in args) + np_rows * fout * 4
    return pl.pallas_call(
        kernel,
        out_shape=jax.ShapeDtypeStruct((np_rows, fout), jnp.float32),
        cost_estimate=pl.CostEstimate(flops=flops, transcendentals=0,
                                      bytes_accessed=byt),
    )(*args)


# ---------------------------------------------------------------------------
# Tiled (grid) path kernels
# ---------------------------------------------------------------------------
def _stats_kernel(h_ref, s_ref):
    """Per-batch-tile partial (sum, sum-of-squares) of h for global BN statistics."""
    h = h_ref[...].astype(jnp.float32)                  # (tb, F)
    s_ref[0, 0:1, :] = jnp.sum(h, axis=0, keepdims=True)
    s_ref[0, 1:2, :] = jnp.sum(h * h, axis=0, keepdims=True)


def _layer_kernel(mu_ref, inv_ref, w_ref, b_ref, h_ref, *out_refs,
                  apply_relu, want_stats, n_rows_valid, tile_rows):
    """BN(global stats) -> ReLU -> Linear (bf16 MXU, f32 accum) [-> ReLU]."""
    y_ref = out_refs[0]

    h = h_ref[...].astype(jnp.float32)                  # bf16 inter-layer storage -> f32 math
    h = (h - mu_ref[...]) * inv_ref[...]                # BatchNorm1d(affine=False)
    h = jnp.maximum(h, 0.0)                             # ReLU

    y = jnp.dot(h.astype(jnp.bfloat16), w_ref[...],     # (tb, F_out), f32 accumulate
                preferred_element_type=jnp.float32)
    y = y + b_ref[...]
    if apply_relu:
        y = jnp.maximum(y, 0.0)                         # ReLU (Dropout p=0 == identity)

    if want_stats and n_rows_valid is not None:
        # Zero padded batch rows so they never contaminate downstream BN statistics.
        row = (pl.program_id(0) * tile_rows
               + jax.lax.broadcasted_iota(jnp.int32, y.shape, 0))
        y = jnp.where(row < n_rows_valid, y, 0.0)

    y_store = y.astype(y_ref.dtype)                     # bf16 for inter-layer activations
    y_ref[...] = y_store

    if want_stats:
        # Stats of exactly what the next layer will read (bf16-rounded), summed in f32.
        ys = y_store.astype(jnp.float32)
        st_ref = out_refs[1]
        st_ref[0, 0:1, :] = jnp.sum(ys, axis=0, keepdims=True)
        st_ref[0, 1:2, :] = jnp.sum(ys * ys, axis=0, keepdims=True)


# ---------------------------------------------------------------------------
# Host-side wrappers (tiled path)
# ---------------------------------------------------------------------------
def _finalize_stats(partials, n):
    """(nb, 2, F) per-tile partial sums -> (mu, inv_std), each (1, F) f32."""
    s = jnp.sum(partials[:, 0, :], axis=0)
    ss = jnp.sum(partials[:, 1, :], axis=0)
    mu = s / n
    var = jnp.maximum(ss / n - mu * mu, 0.0)            # biased var (training-mode BN)
    inv = jax.lax.rsqrt(var + BN_EPS)
    return mu[None, :], inv[None, :]


def _input_stats(xp, nb, tb, fp):
    return pl.pallas_call(
        _stats_kernel,
        out_shape=jax.ShapeDtypeStruct((nb, 2, fp), jnp.float32),
        grid=(nb,),
        in_specs=[pl.BlockSpec((tb, fp), lambda i: (i, 0))],
        out_specs=pl.BlockSpec((1, 2, fp), lambda i: (i, 0, 0)),
        compiler_params=pltpu.CompilerParams(dimension_semantics=("parallel",)),
    )(xp)


# Flipped off automatically if this JAX build rejects pl.Buffered(1) on a BlockSpec.
_SINGLE_BUFFER_RESIDENTS = [True]


def _layer_forward(h, mu, inv, wp, bp, *, nb, tb, apply_relu, want_stats,
                   n_rows_valid, out_dtype):
    np_rows, fin = h.shape
    fout = wp.shape[1]
    h_bytes = h.dtype.itemsize
    out_bytes = jnp.dtype(out_dtype).itemsize

    kernel = functools.partial(
        _layer_kernel, apply_relu=apply_relu, want_stats=want_stats,
        n_rows_valid=n_rows_valid, tile_rows=tb)

    cost = pl.CostEstimate(
        flops=2 * np_rows * fin * fout, transcendentals=0,
        bytes_accessed=(np_rows * fin * h_bytes + np_rows * fout * out_bytes
                        + fin * fout * 2 + (2 * fin + fout) * 4))

    # Explicit VMEM budget: double-buffered activation tiles + residents + temporaries.
    # Only override the default scoped limit when needed; stay under v7x's 64 MiB.
    est = (2 * tb * fin * h_bytes + 2 * tb * fout * out_bytes
           + fin * fout * 2 + (2 * fin + fout) * 4
           + 3 * tb * max(fin, fout) * 4
           + 4 * 2 * fout * 4)
    vmem_limit = None
    if est > (14 << 20):
        vmem_limit = int(min(est * 3 // 2 + (2 << 20), 60 << 20))

    def _run(single_buffer_residents):
        res_kwargs = {}
        if single_buffer_residents:
            # Constant-index operands stay VMEM-resident; single-buffer them so a large
            # weight does not cost 2x its size (matters on v7x, 64 MiB physical VMEM).
            res_kwargs = dict(pipeline_mode=pl.Buffered(1))
        in_specs = [
            pl.BlockSpec((1, fin), lambda i: (0, 0), **res_kwargs),      # mu
            pl.BlockSpec((1, fin), lambda i: (0, 0), **res_kwargs),      # inv_std
            pl.BlockSpec((fin, fout), lambda i: (0, 0), **res_kwargs),   # W (bf16)
            pl.BlockSpec((1, fout), lambda i: (0, 0), **res_kwargs),     # bias
            pl.BlockSpec((tb, fin), lambda i: (i, 0)),                   # activation tile
        ]
        out_shapes = [jax.ShapeDtypeStruct((np_rows, fout), out_dtype)]
        out_specs = [pl.BlockSpec((tb, fout), lambda i: (i, 0))]
        if want_stats:
            out_shapes.append(jax.ShapeDtypeStruct((nb, 2, fout), jnp.float32))
            out_specs.append(pl.BlockSpec((1, 2, fout), lambda i: (i, 0, 0)))
        return pl.pallas_call(
            kernel,
            out_shape=tuple(out_shapes),
            grid=(nb,),
            in_specs=in_specs,
            out_specs=tuple(out_specs),
            compiler_params=pltpu.CompilerParams(
                dimension_semantics=("parallel",),    # v7x: shard batch tiles across TCs
                vmem_limit_bytes=vmem_limit),
            cost_estimate=cost,
        )(mu, inv, wp, bp, h)

    try:
        outs = _run(_SINGLE_BUFFER_RESIDENTS[0])
    except Exception:
        if not _SINGLE_BUFFER_RESIDENTS[0]:
            raise
        _SINGLE_BUFFER_RESIDENTS[0] = False            # fall back to default double buffering
        outs = _run(False)

    if want_stats:
        return outs[0], outs[1]
    return (outs[0] if isinstance(outs, (list, tuple)) else outs), None


# ---------------------------------------------------------------------------
# Public forward
# ---------------------------------------------------------------------------
def multilabel_ffnn_forward(x, params, *, batch_tile=512, force_tiled=False,
                            fused_vmem_budget_bytes=12 << 20):
    """Forward pass of MultiLabelFFNNModel (training-mode BN stats, dropout=identity).

    x: (N, input_dim) f32; params: list of (W (in,out) f32, b (1,out) f32).
    """
    n, f_in = x.shape
    out_dim = params[-1][0].shape[1]
    n_layers = len(params)

    # Pad + pre-cast parameters once (feature dims -> multiples of 128 lanes; padded
    # weight rows/cols and bias lanes are zero, so numerics are unchanged).
    prepped = []
    for w, b in params:
        fi, fo = w.shape
        fip, fop = _round_up(fi, 128), _round_up(fo, 128)
        wp = jnp.zeros((fip, fop), jnp.float32).at[:fi, :fo].set(w).astype(jnp.bfloat16)
        bp = jnp.zeros((1, fop), jnp.float32).at[:, :fo].set(b)
        prepped.append((wp, bp))
    f0p = prepped[0][0].shape[0]
    fmax = max(max(wp.shape) for wp, _ in prepped)

    # ------------------ fused single-kernel path (small / medium) ------------------
    np_rows_f = _round_up(n, 8)
    weight_bytes = sum(int(wp.size) * 2 + int(bp.size) * 4 for wp, bp in prepped)
    fused_bytes = weight_bytes + 4 * np_rows_f * fmax * 4   # activations + temporaries
    if not force_tiled and fused_bytes <= fused_vmem_budget_bytes:
        xp = jnp.zeros((np_rows_f, f0p), jnp.float32).at[:n, :f_in].set(x)
        out = _fused_forward(xp, prepped, n, None if np_rows_f == n else n)
        return out[:n, :out_dim]

    # ------------------------------ tiled (grid) path ------------------------------
    tb = min(_round_up(batch_tile, 16), _round_up(n, 16))
    while _round_up(n, tb) // tb < 2 and tb >= 32:
        tb //= 2                                         # give both v7x TCs work (nb >= 2)
    np_rows = _round_up(n, tb)
    nb = np_rows // tb
    n_rows_valid = None if np_rows == n else n

    # Zero-pad batch rows and feature lanes (input kept f32; inter-layer acts are bf16).
    h = jnp.zeros((np_rows, f0p), jnp.float32).at[:n, :f_in].set(x)

    # Global BN statistics of the (padded) input.
    mu, inv = _finalize_stats(_input_stats(h, nb, tb, f0p), n)

    for l, (wp, bp) in enumerate(prepped):
        last = (l == n_layers - 1)
        h, partials = _layer_forward(
            h, mu, inv, wp, bp, nb=nb, tb=tb,
            apply_relu=not last, want_stats=not last,
            n_rows_valid=None if last else n_rows_valid,
            out_dtype=jnp.float32 if last else jnp.bfloat16)
        if not last:
            mu, inv = _finalize_stats(partials, n)

    return h[:n, :out_dim]


# ---------------------------------------------------------------------------
# Init + reference
# ---------------------------------------------------------------------------
def init_params(key, input_dim, hidden_dim, output_dim):
    """PyTorch-Linear-style init: U(-1/sqrt(fan_in), 1/sqrt(fan_in))."""
    dims = [input_dim] + list(hidden_dim) + [output_dim]
    params = []
    for i in range(len(dims) - 1):
        key, kw, kb = jax.random.split(key, 3)
        bound = 1.0 / np.sqrt(dims[i])
        w = jax.random.uniform(kw, (dims[i], dims[i + 1]), jnp.float32, -bound, bound)
        b = jax.random.uniform(kb, (1, dims[i + 1]), jnp.float32, -bound, bound)
        params.append((w, b))
    return params


def _reference_forward(x, params):
    """Pure-JAX reference with the module's semantics (bf16 matmul inputs, f32 BN)."""
    h = x
    n_layers = len(params)
    for l, (w, b) in enumerate(params):
        mu = jnp.mean(h, axis=0, keepdims=True)
        var = jnp.mean(jnp.square(h - mu), axis=0, keepdims=True)
        h = (h - mu) * jax.lax.rsqrt(var + BN_EPS)
        h = jnp.maximum(h, 0.0)
        h = jnp.dot(h.astype(jnp.bfloat16), w.astype(jnp.bfloat16),
                    preferred_element_type=jnp.float32) + b
        if l != n_layers - 1:
            h = jnp.maximum(h, 0.0)
    return h


if __name__ == "__main__":
    batch = 20              # deliberately not a multiple of the batch tile
    input_dim = 32
    hidden_dim = [64, 48]
    output_dim = 16
    # dropout = 0.0 -> identity in the forward pass

    key = jax.random.PRNGKey(0)
    key, kx = jax.random.split(key)
    x = jax.random.normal(kx, (batch, input_dim), jnp.float32)
    params = init_params(key, input_dim, hidden_dim, output_dim)

    ref = _reference_forward(x, params)

    # 1) Default path: whole network fused into a single pallas_call (fits in VMEM).
    out_fused = jax.block_until_ready(multilabel_ffnn_forward(x, params))
    assert out_fused.shape == (batch, output_dim)
    np.testing.assert_allclose(np.asarray(out_fused), np.asarray(ref),
                               rtol=2e-2, atol=2e-2)

    # 2) Tiled path (forced), small batch tile -> 2 grid steps: exercises padded-row
    #    masking, bf16 inter-layer activations and the per-tile stats epilogue.
    out_tiled = jax.block_until_ready(
        multilabel_ffnn_forward(x, params, batch_tile=16, force_tiled=True))
    assert out_tiled.shape == (batch, output_dim)
    np.testing.assert_allclose(np.asarray(out_tiled), np.asarray(ref),
                               rtol=2e-2, atol=2e-2)

    print("KERNEL_OK")
</pallas_src>

<mosaic_0001>
module attributes {stable_mosaic.version = 11 : i64} {
  func.func @_fused_kernel(%arg0: memref<24x128xf32, #tpu.memory_space<vmem>>, %arg1: memref<128x128xbf16, #tpu.memory_space<vmem>>, %arg2: memref<1x128xf32, #tpu.memory_space<vmem>>, %arg3: memref<128x128xbf16, #tpu.memory_space<vmem>>, %arg4: memref<1x128xf32, #tpu.memory_space<vmem>>, %arg5: memref<128x128xbf16, #tpu.memory_space<vmem>>, %arg6: memref<1x128xf32, #tpu.memory_space<vmem>>, %arg7: memref<24x128xf32, #tpu.memory_space<vmem>>) attributes {dimension_semantics = [], scalar_prefetch = 0 : i64, scratch_operands = 0 : i64, tpu.core_type = #tpu.core_type<tc>} {
    %c0 = arith.constant 0 : index
    %c0_0 = arith.constant 0 : index
    %0 = vector.load %arg0[%c0, %c0_0] : memref<24x128xf32, #tpu.memory_space<vmem>>, vector<24x128xf32>
    %cst = arith.constant dense<0.000000e+00> : vector<128xf32>
    %1 = vector.multi_reduction <add>, %0, %cst [0] : vector<24x128xf32> to vector<128xf32>
    %2 = vector.shape_cast %1 : vector<128xf32> to vector<1x128xf32>
    %cst_1 = arith.constant 5.000000e-02 : f32
    %3 = vector.broadcast %cst_1 : f32 to vector<1x128xf32>
    %4 = arith.mulf %2, %3 : vector<1x128xf32>
    %5 = arith.mulf %0, %0 : vector<24x128xf32>
    %cst_2 = arith.constant dense<0.000000e+00> : vector<128xf32>
    %6 = vector.multi_reduction <add>, %5, %cst_2 [0] : vector<24x128xf32> to vector<128xf32>
    %7 = vector.shape_cast %6 : vector<128xf32> to vector<1x128xf32>
    %cst_3 = arith.constant 5.000000e-02 : f32
    %8 = vector.broadcast %cst_3 : f32 to vector<1x128xf32>
    %9 = arith.mulf %7, %8 : vector<1x128xf32>
    %10 = arith.mulf %4, %4 : vector<1x128xf32>
    %11 = arith.subf %9, %10 : vector<1x128xf32>
    %cst_4 = arith.constant 0.000000e+00 : f32
    %12 = vector.broadcast %cst_4 : f32 to vector<1x128xf32>
    %13 = arith.maximumf %11, %12 : vector<1x128xf32>
    %cst_5 = arith.constant 9.99999974E-6 : f32
    %14 = vector.broadcast %cst_5 : f32 to vector<1x128xf32>
    %15 = arith.addf %13, %14 : vector<1x128xf32>
    %16 = math.rsqrt %15 : vector<1x128xf32>
    %17 = vector.broadcast %4 : vector<1x128xf32> to vector<24x128xf32>
    %18 = arith.subf %0, %17 : vector<24x128xf32>
    %19 = vector.broadcast %16 : vector<1x128xf32> to vector<24x128xf32>
    %20 = arith.mulf %18, %19 : vector<24x128xf32>
    %cst_6 = arith.constant 0.000000e+00 : f32
    %21 = vector.broadcast %cst_6 : f32 to vector<24x128xf32>
    %22 = arith.maximumf %20, %21 : vector<24x128xf32>
    %23 = arith.truncf %22 : vector<24x128xf32> to vector<24x128xbf16>
    %c0_7 = arith.constant 0 : index
    %c0_8 = arith.constant 0 : index
    %24 = vector.load %arg1[%c0_7, %c0_8] : memref<128x128xbf16, #tpu.memory_space<vmem>>, vector<128x128xbf16>
    %cst_9 = arith.constant dense<0.000000e+00> : vector<24x128xf32>
    %25 = tpu.matmul %23, %24, %cst_9 {dimension_numbers = #tpu.dot_dimension_numbers<[1], [0], [0], [1], [0, 0, 1, 1], [], []>} : vector<24x128xbf16>, vector<128x128xbf16>, vector<24x128xf32> -> vector<24x128xf32>
    %c0_10 = arith.constant 0 : index
    %c0_11 = arith.constant 0 : index
    %26 = vector.load %arg2[%c0_10, %c0_11] : memref<1x128xf32, #tpu.memory_space<vmem>>, vector<1x128xf32>
    %27 = vector.broadcast %26 : vector<1x128xf32> to vector<24x128xf32>
    %28 = arith.addf %25, %27 : vector<24x128xf32>
    %cst_12 = arith.constant 0.000000e+00 : f32
    %29 = vector.broadcast %cst_12 : f32 to vector<24x128xf32>
    %30 = arith.maximumf %28, %29 : vector<24x128xf32>
    %31 = tpu.iota {dimensions = array<i32: 0>} : vector<24x128xi32>
    %c20_i32 = arith.constant 20 : i32
    %32 = vector.broadcast %c20_i32 : i32 to vector<24x128xi32>
    %33 = arith.cmpi slt, %31, %32 : vector<24x128xi32>
    %cst_13 = arith.constant 0.000000e+00 : f32
    %34 = vector.broadcast %cst_13 : f32 to vector<24x128xf32>
    %35 = arith.select %33, %30, %34 : vector<24x128xi1>, vector<24x128xf32>
    %cst_14 = arith.constant dense<0.000000e+00> : vector<128xf32>
    %36 = vector.multi_reduction <add>, %35, %cst_14 [0] : vector<24x128xf32> to vector<128xf32>
    %37 = vector.shape_cast %36 : vector<128xf32> to vector<1x128xf32>
    %cst_15 = arith.constant 5.000000e-02 : f32
    %38 = vector.broadcast %cst_15 : f32 to vector<1x128xf32>
    %39 = arith.mulf %37, %38 : vector<1x128xf32>
    %40 = arith.mulf %35, %35 : vector<24x128xf32>
    %cst_16 = arith.constant dense<0.000000e+00> : vector<128xf32>
    %41 = vector.multi_reduction <add>, %40, %cst_16 [0] : vector<24x128xf32> to vector<128xf32>
    %42 = vector.shape_cast %41 : vector<128xf32> to vector<1x128xf32>
    %cst_17 = arith.constant 5.000000e-02 : f32
    %43 = vector.broadcast %cst_17 : f32 to vector<1x128xf32>
    %44 = arith.mulf %42, %43 : vector<1x128xf32>
    %45 = arith.mulf %39, %39 : vector<1x128xf32>
    %46 = arith.subf %44, %45 : vector<1x128xf32>
    %cst_18 = arith.constant 0.000000e+00 : f32
    %47 = vector.broadcast %cst_18 : f32 to vector<1x128xf32>
    %48 = arith.maximumf %46, %47 : vector<1x128xf32>
    %cst_19 = arith.constant 9.99999974E-6 : f32
    %49 = vector.broadcast %cst_19 : f32 to vector<1x128xf32>
    %50 = arith.addf %48, %49 : vector<1x128xf32>
    %51 = math.rsqrt %50 : vector<1x128xf32>
    %52 = vector.broadcast %39 : vector<1x128xf32> to vector<24x128xf32>
    %53 = arith.subf %35, %52 : vector<24x128xf32>
    %54 = vector.broadcast %51 : vector<1x128xf32> to vector<24x128xf32>
    %55 = arith.mulf %53, %54 : vector<24x128xf32>
    %cst_20 = arith.constant 0.000000e+00 : f32
    %56 = vector.broadcast %cst_20 : f32 to vector<24x128xf32>
    %57 = arith.maximumf %55, %56 : vector<24x128xf32>
    %58 = arith.truncf %57 : vector<24x128xf32> to vector<24x128xbf16>
    %c0_21 = arith.constant 0 : index
    %c0_22 = arith.constant 0 : index
    %59 = vector.load %arg3[%c0_21, %c0_22] : memref<128x128xbf16, #tpu.memory_space<vmem>>, vector<128x128xbf16>
    %cst_23 = arith.constant dense<0.000000e+00> : vector<24x128xf32>
    %60 = tpu.matmul %58, %59, %cst_23 {dimension_numbers = #tpu.dot_dimension_numbers<[1], [0], [0], [1], [0, 0, 1, 1], [], []>} : vector<24x128xbf16>, vector<128x128xbf16>, vector<24x128xf32> -> vector<24x128xf32>
    %c0_24 = arith.constant 0 : index
    %c0_25 = arith.constant 0 : index
    %61 = vector.load %arg4[%c0_24, %c0_25] : memref<1x128xf32, #tpu.memory_space<vmem>>, vector<1x128xf32>
    %62 = vector.broadcast %61 : vector<1x128xf32> to vector<24x128xf32>
    %63 = arith.addf %60, %62 : vector<24x128xf32>
    %cst_26 = arith.constant 0.000000e+00 : f32
    %64 = vector.broadcast %cst_26 : f32 to vector<24x128xf32>
    %65 = arith.maximumf %63, %64 : vector<24x128xf32>
    %66 = tpu.iota {dimensions = array<i32: 0>} : vector<24x128xi32>
    %c20_i32_27 = arith.constant 20 : i32
    %67 = vector.broadcast %c20_i32_27 : i32 to vector<24x128xi32>
    %68 = arith.cmpi slt, %66, %67 : vector<24x128xi32>
    %cst_28 = arith.constant 0.000000e+00 : f32
    %69 = vector.broadcast %cst_28 : f32 to vector<24x128xf32>
    %70 = arith.select %68, %65, %69 : vector<24x128xi1>, vector<24x128xf32>
    %cst_29 = arith.constant dense<0.000000e+00> : vector<128xf32>
    %71 = vector.multi_reduction <add>, %70, %cst_29 [0] : vector<24x128xf32> to vector<128xf32>
    %72 = vector.shape_cast %71 : vector<128xf32> to vector<1x128xf32>
    %cst_30 = arith.constant 5.000000e-02 : f32
    %73 = vector.broadcast %cst_30 : f32 to vector<1x128xf32>
    %74 = arith.mulf %72, %73 : vector<1x128xf32>
    %75 = arith.mulf %70, %70 : vector<24x128xf32>
    %cst_31 = arith.constant dense<0.000000e+00> : vector<128xf32>
    %76 = vector.multi_reduction <add>, %75, %cst_31 [0] : vector<24x128xf32> to vector<128xf32>
    %77 = vector.shape_cast %76 : vector<128xf32> to vector<1x128xf32>
    %cst_32 = arith.constant 5.000000e-02 : f32
    %78 = vector.broadcast %cst_32 : f32 to vector<1x128xf32>
    %79 = arith.mulf %77, %78 : vector<1x128xf32>
    %80 = arith.mulf %74, %74 : vector<1x128xf32>
    %81 = arith.subf %79, %80 : vector<1x128xf32>
    %cst_33 = arith.constant 0.000000e+00 : f32
    %82 = vector.broadcast %cst_33 : f32 to vector<1x128xf32>
    %83 = arith.maximumf %81, %82 : vector<1x128xf32>
    %cst_34 = arith.constant 9.99999974E-6 : f32
    %84 = vector.broadcast %cst_34 : f32 to vector<1x128xf32>
    %85 = arith.addf %83, %84 : vector<1x128xf32>
    %86 = math.rsqrt %85 : vector<1x128xf32>
    %87 = vector.broadcast %74 : vector<1x128xf32> to vector<24x128xf32>
    %88 = arith.subf %70, %87 : vector<24x128xf32>
    %89 = vector.broadcast %86 : vector<1x128xf32> to vector<24x128xf32>
    %90 = arith.mulf %88, %89 : vector<24x128xf32>
    %cst_35 = arith.constant 0.000000e+00 : f32
    %91 = vector.broadcast %cst_35 : f32 to vector<24x128xf32>
    %92 = arith.maximumf %90, %91 : vector<24x128xf32>
    %93 = arith.truncf %92 : vector<24x128xf32> to vector<24x128xbf16>
    %c0_36 = arith.constant 0 : index
    %c0_37 = arith.constant 0 : index
    %94 = vector.load %arg5[%c0_36, %c0_37] : memref<128x128xbf16, #tpu.memory_space<vmem>>, vector<128x128xbf16>
    %cst_38 = arith.constant dense<0.000000e+00> : vector<24x128xf32>
    %95 = tpu.matmul %93, %94, %cst_38 {dimension_numbers = #tpu.dot_dimension_numbers<[1], [0], [0], [1], [0, 0, 1, 1], [], []>} : vector<24x128xbf16>, vector<128x128xbf16>, vector<24x128xf32> -> vector<24x128xf32>
    %c0_39 = arith.constant 0 : index
    %c0_40 = arith.constant 0 : index
    %96 = vector.load %arg6[%c0_39, %c0_40] : memref<1x128xf32, #tpu.memory_space<vmem>>, vector<1x128xf32>
    %97 = vector.broadcast %96 : vector<1x128xf32> to vector<24x128xf32>
    %98 = arith.addf %95, %97 : vector<24x128xf32>
    %c0_41 = arith.constant 0 : index
    %c0_42 = arith.constant 0 : index
    %99 = vector.load %arg7[%c0_41, %c0_42] : memref<24x128xf32, #tpu.memory_space<vmem>>, vector<24x128xf32>
    tpu.vector_store %arg7[%c0_41, %c0_42], %98 {strides = array<i32>} : memref<24x128xf32, #tpu.memory_space<vmem>>, vector<24x128xf32>,
    return
  }
}

</mosaic_0001>

<llo_original>
// kernel: tpu_custom_call.1
$region0: #{tpu_custom_call.1}
  #allocation0 [shape = 'u32[]', space=smem, size = 0x4, offset = 0x4, fixed_abs, tag = 'smem constant byte address 0x4 - core index']
  #allocation1 [shape = 'u32[144,128]{1,0:T(1,128)}', space=vmem, size = 0x12000, scoped, tag = 'internal scratch']
  %s0 = inlined_call_operand.hbm [shape: f32[24,128], index: 0, kind: input, shape index: {}]
  %s1 = inlined_call_operand.hbm [shape: bf16[128,128], index: 1, kind: input, shape index: {}]
  %s2 = inlined_call_operand.vmem [shape: f32[1,128], index: 2, kind: input, shape index: {}]
  %s3 = inlined_call_operand.hbm [shape: bf16[128,128], index: 3, kind: input, shape index: {}]
  %s4 = inlined_call_operand.vmem [shape: f32[1,128], index: 4, kind: input, shape index: {}]
  %s5 = inlined_call_operand.hbm [shape: bf16[128,128], index: 5, kind: input, shape index: {}]
  %s6 = inlined_call_operand.vmem [shape: f32[1,128], index: 6, kind: input, shape index: {}]
  %s7 = inlined_call_operand.hbm [shape: f32[24,128], index: 7, kind: output, shape index: {}]
  %s8 = sld [smem:[#allocation0]]
  $region54: #{tpu_custom_call.1} parent=0
    _
  %s10 = ssub.s32 1, %s8
  %s11 = scalar_select 0, %s10, %s8
  $region1: #{tpu_custom_call.1} parent=0
    #allocation2 [shape = 'u8[12288]{0}', space=vmem, size = 0x3000, scoped, tag = 'input window, operand 0, single buffered']
    #allocation3 [shape = 's32[1]{0}', space=sflag, size = 0x4, scoped, tag = 'scoped memory for tpu_custom_call.1']
    #allocation4 [shape = 's32[1]{0}', space=sflag, size = 0x4, scoped, tag = 'scoped memory for tpu_custom_call.1']
    #allocation5 [shape = 'u8[32768]{0}', space=vmem, size = 0x8000, scoped, tag = 'input window, operand 1, single buffered']
    #allocation6 [shape = 's32[1]{0}', space=sflag, size = 0x4, scoped, tag = 'scoped memory for tpu_custom_call.1']
    #allocation7 [shape = 'u8[32768]{0}', space=vmem, size = 0x8000, scoped, tag = 'input window, operand 3, single buffered']
    #allocation8 [shape = 'u8[32768]{0}', space=vmem, size = 0x8000, scoped, tag = 'input window, operand 5, single buffered']
    #allocation9 [shape = 's32[1]{0}', space=sflag, size = 0x4, scoped, tag = 'scoped memory for tpu_custom_call.1']
    #allocation10 [shape = 'u8[12288]{0}', space=vmem, size = 0x3000, scoped, tag = 'output window, operand 0, single buffered']
    %12 = vsyncpa [#allocation3], 0
    %13 = vsyncpa [#allocation6], 0
    %14 = vsyncpa [#allocation9], 0
    %15 = vsyncpa [#allocation4], 0
    // Predicated region
    $region2: #{tpu_custom_call.1} parent=1 // pred_check
      _
    $region3: #{tpu_custom_call.1} parent=1 // pred_check_branch
      %17 = sbr.rel (0) target = $region5
    $region4: #{tpu_custom_call.1} parent=1 // pred_region
      %s19 = ssub.s32 384, 384
      %20 = vsyncadd [#allocation3], %s19
      %s21 = sshll.u32 [#allocation2], 4
      %s22 = int_to_ptr.vmem [resolvable:$true] %s21
      %27 = dma.hbm_to_vmem [thread:$0]  %s0, 384, %s22, [#allocation3], 128, 128, 8
    $region5: #{tpu_custom_call.1} parent=1 // pred_fallthru
      _
    // Predicated region
    $region6: #{tpu_custom_call.1} parent=1 // pred_check
      _
    $region7: #{tpu_custom_call.1} parent=1 // pred_check_branch
      %29 = sbr.rel (0) target = $region9
    $region8: #{tpu_custom_call.1} parent=1 // pred_region
      %s31 = ssub.s32 1024, 1024
      %32 = vsyncadd [#allocation6], %s31
      %s33 = sshll.u32 [#allocation5], 4
      %s34 = int_to_ptr.vmem [resolvable:$true] %s33
      %39 = dma.hbm_to_vmem [thread:$0]  %s1, 1024, %s34, [#allocation6], 64, 64, 4
    $region9: #{tpu_custom_call.1} parent=1 // pred_fallthru
      _
    // Predicated region
    $region10: #{tpu_custom_call.1} parent=1 // pred_check
      _
    $region11: #{tpu_custom_call.1} parent=1 // pred_check_branch
      %41 = sbr.rel (0) target = $region13
    $region12: #{tpu_custom_call.1} parent=1 // pred_region
      _
    $region13: #{tpu_custom_call.1} parent=1 // pred_fallthru
      _
    // Predicated region
    $region14: #{tpu_custom_call.1} parent=1 // pred_check
      _
    $region15: #{tpu_custom_call.1} parent=1 // pred_check_branch
      %43 = sbr.rel (0) target = $region17
    $region16: #{tpu_custom_call.1} parent=1 // pred_region
      %s45 = ssub.s32 1024, 1024
      %46 = vsyncadd [#allocation6], %s45
      %s47 = sshll.u32 [#allocation7], 4
      %s48 = int_to_ptr.vmem [resolvable:$true] %s47
      %53 = dma.hbm_to_vmem [thread:$0]  %s3, 1024, %s48, [#allocation6], 64, 64, 4
    $region17: #{tpu_custom_call.1} parent=1 // pred_fallthru
      _
    // Predicated region
    $region18: #{tpu_custom_call.1} parent=1 // pred_check
      _
    $region19: #{tpu_custom_call.1} parent=1 // pred_check_branch
      %55 = sbr.rel (0) target = $region21
    $region20: #{tpu_custom_call.1} parent=1 // pred_region
      _
    $region21: #{tpu_custom_call.1} parent=1 // pred_fallthru
      _
    // Predicated region
    $region22: #{tpu_custom_call.1} parent=1 // pred_check
      _
    $region23: #{tpu_custom_call.1} parent=1 // pred_check_branch
      %57 = sbr.rel (0) target = $region25
    $region24: #{tpu_custom_call.1} parent=1 // pred_region
      %s59 = ssub.s32 1024, 1024
      %60 = vsyncadd [#allocation9], %s59
      %s61 = sshll.u32 [#allocation8], 4
      %s62 = int_to_ptr.vmem [resolvable:$true] %s61
      %67 = dma.hbm_to_vmem [thread:$0]  %s5, 1024, %s62, [#allocation9], 64, 64, 4
    $region25: #{tpu_custom_call.1} parent=1 // pred_fallthru
      _
    // Predicated region
    $region26: #{tpu_custom_call.1} parent=1 // pred_check
      _
    $region27: #{tpu_custom_call.1} parent=1 // pred_check_branch
      %69 = sbr.rel (0) target = $region29
    $region28: #{tpu_custom_call.1} parent=1 // pred_region
      _
    $region29: #{tpu_custom_call.1} parent=1 // pred_fallthru
      _
    // Predicated region
    $region30: #{tpu_custom_call.1} parent=1 // pred_check
      _
    $region31: #{tpu_custom_call.1} parent=1 // pred_check_branch
      %71 = sbr.rel (0) target = $region33
    $region32: #{tpu_custom_call.1} parent=1 // pred_region
      %72 = dma.done [#allocation3], 384
    $region33: #{tpu_custom_call.1} parent=1 // pred_fallthru
      _
    // Predicated region
    $region34: #{tpu_custom_call.1} parent=1 // pred_check
      _
    $region35: #{tpu_custom_call.1} parent=1 // pred_check_branch
      %74 = sbr.rel (0) target = $region37
    $region36: #{tpu_custom_call.1} parent=1 // pred_region
      %75 = dma.done [#allocation6], 1024
    $region37: #{tpu_custom_call.1} parent=1 // pred_fallthru
      _
    // Predicated region
    $region38: #{tpu_custom_call.1} parent=1 // pred_check
      _
    $region39: #{tpu_custom_call.1} parent=1 // pred_check_branch
      %77 = sbr.rel (0) target = $region41
    $region40: #{tpu_custom_call.1} parent=1 // pred_region
      %78 = dma.done [#allocation6], 1024
    $region41: #{tpu_custom_call.1} parent=1 // pred_fallthru
      _
    // Predicated region
    $region42: #{tpu_custom_call.1} parent=1 // pred_check
      _
    $region43: #{tpu_custom_call.1} parent=1 // pred_check_branch
      %80 = sbr.rel (0) target = $region45
    $region44: #{tpu_custom_call.1} parent=1 // pred_region
      %81 = dma.done [#allocation9], 1024
    $region45: #{tpu_custom_call.1} parent=1 // pred_fallthru
      _
    %v83 = vld [vmem:[#allocation2] sm:$0xff]
    %v84 = vld [vmem:[#allocation2 + $0x8] sm:$0xff]
    %v85 = vld [vmem:[#allocation2 + $0x10] sm:$0xff]
    %v86 = vadd.f32 %v83, %v84
    %v87 = vadd.f32 %v86, %v85
    %v88 = vrot.slane %v87, 4
    %v89 = vadd.f32 %v87, %v88
    %v90 = vrot.slane %v89, 2
    %v91 = vadd.f32 %v89, %v90
    %v92 = vrot.slane %v91, 1
    %v93 = vadd.f32 %v91, %v92
    %v94 = vmul.f32 %v93, 0.05
    %v95 = vmul.f32 %v83, %v83
    %v96 = vmul.f32 %v84, %v84
    %v97 = vmul.f32 %v85, %v85
    %v98 = vadd.f32 %v95, %v96
    %v99 = vadd.f32 %v98, %v97
    %v100 = vrot.slane %v99, 4
    %v101 = vadd.f32 %v99, %v100
    %v102 = vrot.slane %v101, 2
    %v103 = vadd.f32 %v101, %v102
    %v104 = vrot.slane %v103, 1
    %v105 = vadd.f32 %v103, %v104
    %v106 = vmul.f32 %v105, 0.05
    %v107 = vmul.f32 %v94, %v94
    %v108 = vsub.f32 %v106, %v107
    %v109 = vmax.f32 %v108, 0.0
    %v110 = vadd.f32 %v109, 1e-05
    %v111 = vrsqrt.pop %v110
    %v112 = vsub.f32 %v83, %v94
    %v113 = vsub.f32 %v84, %v94
    %v114 = vsub.f32 %v85, %v94
    %v115 = vmul.f32 %v112, %v111
    %v116 = vmul.f32 %v113, %v111
    %v117 = vmul.f32 %v114, %v111
    %v118 = vmax.f32 %v115, 0.0
    %v119 = vmax.f32 %v116, 0.0
    %v120 = vmax.f32 %v117, 0.0
    %v121 = vpack.c.bf16 %v119, %v118
    %v122 = vpack.c.bf16 %v120, %v120
    %v123 = vld [vmem:[#allocation5] sm:$0xf]
    %v124 = vld [vmem:[#allocation5 + $0x4] sm:$0xf]
    %v125 = vld [vmem:[#allocation5 + $0x8] sm:$0xf]
    %v126 = vld [vmem:[#allocation5 + $0xc] sm:$0xf]
    %v127 = vld [vmem:[#allocation5 + $0x10] sm:$0xf]
    %v128 = vld [vmem:[#allocation5 + $0x14] sm:$0xf]
    %v129 = vld [vmem:[#allocation5 + $0x18] sm:$0xf]
    %v130 = vld [vmem:[#allocation5 + $0x1c] sm:$0xf]
    %v131 = vld [vmem:[#allocation5 + $0x20] sm:$0xf]
    %v132 = vld [vmem:[#allocation5 + $0x24] sm:$0xf]
    %v133 = vld [vmem:[#allocation5 + $0x28] sm:$0xf]
    %v134 = vld [vmem:[#allocation5 + $0x2c] sm:$0xf]
    %v135 = vld [vmem:[#allocation5 + $0x30] sm:$0xf]
    %v136 = vld [vmem:[#allocation5 + $0x34] sm:$0xf]
    %v137 = vld [vmem:[#allocation5 + $0x38] sm:$0xf]
    %v138 = vld [vmem:[#allocation5 + $0x3c] sm:$0xf]
    %v139 = vld [vmem:[%s2] sm:$0x1]
    %v141 = vlaneseq
    %v142 = vshrl.u32 %v141, 7
    %v143 = vsub.s32 0, %v142
    %v144 = vrot.slane %v139, %v143
    %v162 = vunpack.c.l.b16 %v123
    %v163 = vunpack.c.l.b16 %v124
    %v164 = vunpack.c.l.b16 %v125
    %v165 = vunpack.c.l.b16 %v126
    %v166 = vunpack.c.l.b16 %v127
    %v167 = vunpack.c.l.b16 %v128
    %v168 = vunpack.c.l.b16 %v129
    %v169 = vunpack.c.l.b16 %v130
    %v170 = vunpack.c.l.b16 %v131
    %v171 = vunpack.c.l.b16 %v132
    %v172 = vunpack.c.l.b16 %v133
    %v173 = vunpack.c.l.b16 %v134
    %v174 = vunpack.c.l.b16 %v135
    %v175 = vunpack.c.l.b16 %v136
    %v176 = vunpack.c.l.b16 %v137
    %v177 = vunpack.c.l.b16 %v138
    %v178 = vpack.c.b16 %v163, %v162
    %v179 = vpack.c.b16 %v165, %v164
    %v180 = vpack.c.b16 %v167, %v166
    %v181 = vpack.c.b16 %v169, %v168
    %v182 = vpack.c.b16 %v171, %v170
    %v183 = vpack.c.b16 %v173, %v172
    %v184 = vpack.c.b16 %v175, %v174
    %v185 = vpack.c.b16 %v177, %v176
    %194 = vmatprep.subr.bf16.mxu0 0
    %195 = vmatpush1.bf16.msra.mxu0 %v178
    %196 = vmatprep.subr.bf16.mxu0 0
    %197 = vmatpush1.bf16.msra.mxu0 %v179
    %198 = vmatprep.subr.bf16.mxu0 0
    %199 = vmatpush1.bf16.msra.mxu0 %v180
    %200 = vmatprep.subr.bf16.mxu0 0
    %201 = vmatpush1.bf16.msra.mxu0 %v181
    %202 = vmatprep.subr.bf16.mxu0 0
    %203 = vmatpush1.bf16.msra.mxu0 %v182
    %204 = vmatprep.subr.bf16.mxu0 0
    %205 = vmatpush1.bf16.msra.mxu0 %v183
    %206 = vmatprep.subr.bf16.mxu0 0
    %207 = vmatpush1.bf16.msra.mxu0 %v184
    %208 = vmatprep.subr.bf16.mxu0 0
    %209 = vmatpush1.bf16.msra.mxu0 %v185
    %210 = vmatprep.subr.bf16.mxu0 0
    %211 = vmatpush1.bf16.msra.mxu0 0
    %212 = vmatprep.subr.bf16.mxu0 0
    %213 = vmatpush1.bf16.msra.mxu0 0
    %214 = vmatprep.subr.bf16.mxu0 0
    %215 = vmatpush1.bf16.msra.mxu0 0
    %216 = vmatprep.subr.bf16.mxu0 0
    %217 = vmatpush1.bf16.msra.mxu0 0
    %218 = vmatprep.subr.bf16.mxu0 0
    %219 = vmatpush1.bf16.msra.mxu0 0
    %220 = vmatprep.subr.bf16.mxu0 0
    %221 = vmatpush1.bf16.msra.mxu0 0
    %222 = vmatprep.subr.bf16.mxu0 0
    %223 = vmatpush1.bf16.msra.mxu0 0
    %224 = vmatprep.subr.bf16.mxu0 0
    %225 = vmatpush1.bf16.msra.mxu0 0
    %226 = vmatprep.mubr.bf16.mxu0 0
    %227 = vmatmul.mubr.bf16.gmra.mrb[0].mxu0 %v121
    %v228 = vpop.f32.mrb[0].mxu0
    %v229 = vadd.f32 %v144, %v228
    %v230 = vpop.f32.mrb[0].mxu0
    %v231 = vpop.f32.mrb[0].mxu0
    %v232 = vadd.f32 %v144, %v231
    %v233 = vpop.f32.mrb[0].mxu0
    %234 = vmatprep.mubr.bf16.mxu0 0
    %235 = vmatmul.mubr.bf16.gmra.mrb[0].mxu0 %v122
    %v236 = vpop.f32.mrb[0].mxu0
    %v237 = vadd.f32 %v144, %v236
    %v238 = vpop.f32.mrb[0].mxu0
    %v239 = vpop.f32.mrb[0].mxu0
    %v240 = vpop.f32.mrb[0].mxu0
    %241 = vdwg.mxu0
    %v242 = vmax.f32 %v229, 0.0
    %v243 = vmax.f32 %v232, 0.0
    %v244 = vmax.f32 %v237, 0.0
    %v245 = vlaneseq
    %v246 = vshrl.u32 %v245, 7
    %v247 = vadd.s32 %v246, 8
    %v248 = vadd.s32 %v246, 16
    %vm249 = vcmp.lt.s32.totalorder %v246, 20
    %vm250 = vcmp.lt.s32.totalorder %v247, 20
    %vm251 = vcmp.lt.s32.totalorder %v248, 20
    %v252 = vsel %vm249, %v242, 0.0
    %v253 = vsel %vm250, %v243, 0.0
    %v254 = vsel %vm251, %v244, 0.0
    %v255 = vadd.f32 %v252, %v253
    %v256 = vadd.f32 %v255, %v254
    %v257 = vrot.slane %v256, 4
    %v258 = vadd.f32 %v256, %v257
    %v259 = vrot.slane %v258, 2
    %v260 = vadd.f32 %v258, %v259
    %v261 = vrot.slane %v260, 1
    %v262 = vadd.f32 %v260, %v261
    %v263 = vmul.f32 %v262, 0.05
    %v264 = vmul.f32 %v252, %v252
    %v265 = vmul.f32 %v253, %v253
    %v266 = vmul.f32 %v254, %v254
    %v267 = vadd.f32 %v264, %v265
    %v268 = vadd.f32 %v267, %v266
    %v269 = vrot.slane %v268, 4
    %v270 = vadd.f32 %v268, %v269
    %v271 = vrot.slane %v270, 2
    %v272 = vadd.f32 %v270, %v271
    %v273 = vrot.slane %v272, 1
    %v274 = vadd.f32 %v272, %v273
    %v275 = vmul.f32 %v274, 0.05
    %v276 = vmul.f32 %v263, %v263
    %v277 = vsub.f32 %v275, %v276
    %v278 = vmax.f32 %v277, 0.0
    %v279 = vadd.f32 %v278, 1e-05
    %v280 = vrsqrt.pop %v279
    %v281 = vsub.f32 %v252, %v263
    %v282 = vsub.f32 %v253, %v263
    %v283 = vsub.f32 %v254, %v263
    %v284 = vmul.f32 %v281, %v280
    %v285 = vmul.f32 %v282, %v280
    %v286 = vmul.f32 %v283, %v280
    %v287 = vmax.f32 %v284, 0.0
    %v288 = vmax.f32 %v285, 0.0
    %v289 = vmax.f32 %v286, 0.0
    %v290 = vpack.c.bf16 %v288, %v287
    %v291 = vpack.c.bf16 %v289, %v289
    %v292 = vld [vmem:[#allocation7] sm:$0xf]
    %v293 = vld [vmem:[#allocation7 + $0x4] sm:$0xf]
    %v294 = vld [vmem:[#allocation7 + $0x8] sm:$0xf]
    %v295 = vld [vmem:[#allocation7 + $0xc] sm:$0xf]
    %v296 = vld [vmem:[#allocation7 + $0x10] sm:$0xf]
    %v297 = vld [vmem:[#allocation7 + $0x14] sm:$0xf]
    %v298 = vld [vmem:[#allocation7 + $0x18] sm:$0xf]
    %v299 = vld [vmem:[#allocation7 + $0x1c] sm:$0xf]
    %v300 = vld [vmem:[#allocation7 + $0x20] sm:$0xf]
    %v301 = vld [vmem:[#allocation7 + $0x24] sm:$0xf]
    %v302 = vld [vmem:[#allocation7 + $0x28] sm:$0xf]
    %v303 = vld [vmem:[#allocation7 + $0x2c] sm:$0xf]
    %v304 = vld [vmem:[#allocation7 + $0x30] sm:$0xf]
    %v305 = vld [vmem:[#allocation7 + $0x34] sm:$0xf]
    %v306 = vld [vmem:[#allocation7 + $0x38] sm:$0xf]
    %v307 = vld [vmem:[#allocation7 + $0x3c] sm:$0xf]
    %v308 = vld [vmem:[%s4] sm:$0x1]
    %v310 = vlaneseq
    %v311 = vshrl.u32 %v310, 7
    %v312 = vsub.s32 0, %v311
    %v313 = vrot.slane %v308, %v312
    %v331 = vunpack.c.l.b16 %v292
    %v332 = vunpack.c.l.b16 %v293
    %v333 = vunpack.c.l.b16 %v294
    %v334 = vunpack.c.l.b16 %v295
    %v335 = vunpack.c.l.b16 %v296
    %v336 = vunpack.c.l.b16 %v297
    %v337 = vunpack.c.l.b16 %v298
    %v338 = vunpack.c.l.b16 %v299
    %v339 = vunpack.c.l.b16 %v300
    %v340 = vunpack.c.l.b16 %v301
    %v341 = vunpack.c.l.b16 %v302
    %v342 = vunpack.c.l.b16 %v303
    %v343 = vunpack.c.l.b16 %v304
    %v344 = vunpack.c.l.b16 %v305
    %v345 = vunpack.c.l.b16 %v306
    %v346 = vunpack.c.l.b16 %v307
    %v347 = vpack.c.b16 %v332, %v331
    %v348 = vpack.c.b16 %v334, %v333
    %v349 = vpack.c.b16 %v336, %v335
    %v350 = vpack.c.b16 %v338, %v337
    %v351 = vpack.c.b16 %v340, %v339
    %v352 = vpack.c.b16 %v342, %v341
    %v353 = vpack.c.b16 %v344, %v343
    %v354 = vpack.c.b16 %v346, %v345
    %363 = vmatprep.subr.bf16.mxu0 0
    %364 = vmatpush1.bf16.msra.mxu0 %v347
    %365 = vmatprep.subr.bf16.mxu0 0
    %366 = vmatpush1.bf16.msra.mxu0 %v348
    %367 = vmatprep.subr.bf16.mxu0 0
    %368 = vmatpush1.bf16.msra.mxu0 %v349
    %369 = vmatprep.subr.bf16.mxu0 0
    %370 = vmatpush1.bf16.msra.mxu0 %v350
    %371 = vmatprep.subr.bf16.mxu0 0
    %372 = vmatpush1.bf16.msra.mxu0 %v351
    %373 = vmatprep.subr.bf16.mxu0 0
    %374 = vmatpush1.bf16.msra.mxu0 %v352
    %375 = vmatprep.subr.bf16.mxu0 0
    %376 = vmatpush1.bf16.msra.mxu0 %v353
    %377 = vmatprep.subr.bf16.mxu0 0
    %378 = vmatpush1.bf16.msra.mxu0 %v354
    %379 = vmatprep.subr.bf16.mxu0 0
    %380 = vmatpush1.bf16.msra.mxu0 0
    %381 = vmatprep.subr.bf16.mxu0 0
    %382 = vmatpush1.bf16.msra.mxu0 0
    %383 = vmatprep.subr.bf16.mxu0 0
    %384 = vmatpush1.bf16.msra.mxu0 0
    %385 = vmatprep.subr.bf16.mxu0 0
    %386 = vmatpush1.bf16.msra.mxu0 0
    %387 = vmatprep.subr.bf16.mxu0 0
    %388 = vmatpush1.bf16.msra.mxu0 0
    %389 = vmatprep.subr.bf16.mxu0 0
    %390 = vmatpush1.bf16.msra.mxu0 0
    %391 = vmatprep.subr.bf16.mxu0 0
    %392 = vmatpush1.bf16.msra.mxu0 0
    %393 = vmatprep.subr.bf16.mxu0 0
    %394 = vmatpush1.bf16.msra.mxu0 0
    %395 = vmatprep.mubr.bf16.mxu0 0
    %396 = vmatmul.mubr.bf16.gmra.mrb[0].mxu0 %v290
    %v397 = vpop.f32.mrb[0].mxu0
    %v398 = vadd.f32 %v313, %v397
    %v399 = vpop.f32.mrb[0].mxu0
    %v400 = vpop.f32.mrb[0].mxu0
    %v401 = vadd.f32 %v313, %v400
    %v402 = vpop.f32.mrb[0].mxu0
    %403 = vmatprep.mubr.bf16.mxu0 0
    %404 = vmatmul.mubr.bf16.gmra.mrb[0].mxu0 %v291
    %v405 = vpop.f32.mrb[0].mxu0
    %v406 = vadd.f32 %v313, %v405
    %v407 = vpop.f32.mrb[0].mxu0
    %v408 = vpop.f32.mrb[0].mxu0
    %v409 = vpop.f32.mrb[0].mxu0
    %410 = vdwg.mxu0
    %v411 = vmax.f32 %v398, 0.0
    %v412 = vmax.f32 %v401, 0.0
    %v413 = vmax.f32 %v406, 0.0
    %v414 = vsel %vm249, %v411, 0.0
    %v415 = vsel %vm250, %v412, 0.0
    %v416 = vsel %vm251, %v413, 0.0
    %v417 = vadd.f32 %v414, %v415
    %v418 = vadd.f32 %v417, %v416
    %v419 = vrot.slane %v418, 4
    %v420 = vadd.f32 %v418, %v419
    %v421 = vrot.slane %v420, 2
    %v422 = vadd.f32 %v420, %v421
    %v423 = vrot.slane %v422, 1
    %v424 = vadd.f32 %v422, %v423
    %v425 = vmul.f32 %v424, 0.05
    %v426 = vmul.f32 %v414, %v414
    %v427 = vmul.f32 %v415, %v415
    %v428 = vmul.f32 %v416, %v416
    %v429 = vadd.f32 %v426, %v427
    %v430 = vadd.f32 %v429, %v428
    %v431 = vrot.slane %v430, 4
    %v432 = vadd.f32 %v430, %v431
    %v433 = vrot.slane %v432, 2
    %v434 = vadd.f32 %v432, %v433
    %v435 = vrot.slane %v434, 1
    %v436 = vadd.f32 %v434, %v435
    %v437 = vmul.f32 %v436, 0.05
    %v438 = vmul.f32 %v425, %v425
    %v439 = vsub.f32 %v437, %v438
    %v440 = vmax.f32 %v439, 0.0
    %v441 = vadd.f32 %v440, 1e-05
    %v442 = vrsqrt.pop %v441
    %v443 = vsub.f32 %v414, %v425
    %v444 = vsub.f32 %v415, %v425
    %v445 = vsub.f32 %v416, %v425
    %v446 = vmul.f32 %v443, %v442
    %v447 = vmul.f32 %v444, %v442
    %v448 = vmul.f32 %v445, %v442
    %v449 = vmax.f32 %v446, 0.0
    %v450 = vmax.f32 %v447, 0.0
    %v451 = vmax.f32 %v448, 0.0
    %v452 = vpack.c.bf16 %v450, %v449
    %v453 = vpack.c.bf16 %v451, %v451
    %v454 = vld [vmem:[#allocation8] sm:$0xf]
    %v455 = vld [vmem:[#allocation8 + $0x4] sm:$0xf]
    %v456 = vld [vmem:[#allocation8 + $0x8] sm:$0xf]
    %v457 = vld [vmem:[#allocation8 + $0xc] sm:$0xf]
    %v458 = vld [vmem:[#allocation8 + $0x10] sm:$0xf]
    %v459 = vld [vmem:[#allocation8 + $0x14] sm:$0xf]
    %v460 = vld [vmem:[#allocation8 + $0x18] sm:$0xf]
    %v461 = vld [vmem:[#allocation8 + $0x1c] sm:$0xf]
    %v462 = vld [vmem:[#allocation8 + $0x20] sm:$0xf]
    %v463 = vld [vmem:[#allocation8 + $0x24] sm:$0xf]
    %v464 = vld [vmem:[#allocation8 + $0x28] sm:$0xf]
    %v465 = vld [vmem:[#allocation8 + $0x2c] sm:$0xf]
    %v466 = vld [vmem:[#allocation8 + $0x30] sm:$0xf]
    %v467 = vld [vmem:[#allocation8 + $0x34] sm:$0xf]
    %v468 = vld [vmem:[#allocation8 + $0x38] sm:$0xf]
    %v469 = vld [vmem:[#allocation8 + $0x3c] sm:$0xf]
    %v470 = vld [vmem:[%s6] sm:$0x1]
    %v472 = vlaneseq
    %v473 = vshrl.u32 %v472, 7
    %v474 = vsub.s32 0, %v473
    %v475 = vrot.slane %v470, %v474
    %v493 = vunpack.c.l.b16 %v454
    %v494 = vunpack.c.l.b16 %v455
    %v495 = vunpack.c.l.b16 %v456
    %v496 = vunpack.c.l.b16 %v457
    %v497 = vunpack.c.l.b16 %v458
    %v498 = vunpack.c.l.b16 %v459
    %v499 = vunpack.c.l.b16 %v460
    %v500 = vunpack.c.l.b16 %v461
    %v501 = vunpack.c.l.b16 %v462
    %v502 = vunpack.c.l.b16 %v463
    %v503 = vunpack.c.l.b16 %v464
    %v504 = vunpack.c.l.b16 %v465
    %v505 = vunpack.c.l.b16 %v466
    %v506 = vunpack.c.l.b16 %v467
    %v507 = vunpack.c.l.b16 %v468
    %v508 = vunpack.c.l.b16 %v469
    %v509 = vpack.c.b16 %v494, %v493
    %v510 = vpack.c.b16 %v496, %v495
    %v511 = vpack.c.b16 %v498, %v497
    %v512 = vpack.c.b16 %v500, %v499
    %v513 = vpack.c.b16 %v502, %v501
    %v514 = vpack.c.b16 %v504, %v503
    %v515 = vpack.c.b16 %v506, %v505
    %v516 = vpack.c.b16 %v508, %v507
    %525 = vmatprep.subr.bf16.mxu0 0
    %526 = vmatpush1.bf16.msra.mxu0 %v509
    %527 = vmatprep.subr.bf16.mxu0 0
    %528 = vmatpush1.bf16.msra.mxu0 %v510
    %529 = vmatprep.subr.bf16.mxu0 0
    %530 = vmatpush1.bf16.msra.mxu0 %v511
    %531 = vmatprep.subr.bf16.mxu0 0
    %532 = vmatpush1.bf16.msra.mxu0 %v512
    %533 = vmatprep.subr.bf16.mxu0 0
    %534 = vmatpush1.bf16.msra.mxu0 %v513
    %535 = vmatprep.subr.bf16.mxu0 0
    %536 = vmatpush1.bf16.msra.mxu0 %v514
    %537 = vmatprep.subr.bf16.mxu0 0
    %538 = vmatpush1.bf16.msra.mxu0 %v515
    %539 = vmatprep.subr.bf16.mxu0 0
    %540 = vmatpush1.bf16.msra.mxu0 %v516
    %541 = vmatprep.subr.bf16.mxu0 0
    %542 = vmatpush1.bf16.msra.mxu0 0
    %543 = vmatprep.subr.bf16.mxu0 0
    %544 = vmatpush1.bf16.msra.mxu0 0
    %545 = vmatprep.subr.bf16.mxu0 0
    %546 = vmatpush1.bf16.msra.mxu0 0
    %547 = vmatprep.subr.bf16.mxu0 0
    %548 = vmatpush1.bf16.msra.mxu0 0
    %549 = vmatprep.subr.bf16.mxu0 0
    %550 = vmatpush1.bf16.msra.mxu0 0
    %551 = vmatprep.subr.bf16.mxu0 0
    %552 = vmatpush1.bf16.msra.mxu0 0
    %553 = vmatprep.subr.bf16.mxu0 0
    %554 = vmatpush1.bf16.msra.mxu0 0
    %555 = vmatprep.subr.bf16.mxu0 0
    %556 = vmatpush1.bf16.msra.mxu0 0
    %557 = vmatprep.mubr.bf16.mxu0 0
    %558 = vmatmul.mubr.bf16.gmra.mrb[0].mxu0 %v452
    %v559 = vpop.f32.mrb[0].mxu0
    %v560 = vadd.f32 %v475, %v559
    %v561 = vpop.f32.mrb[0].mxu0
    %v562 = vpop.f32.mrb[0].mxu0
    %v563 = vadd.f32 %v475, %v562
    %v564 = vpop.f32.mrb[0].mxu0
    %565 = vmatprep.mubr.bf16.mxu0 0
    %566 = vmatmul.mubr.bf16.gmra.mrb[0].mxu0 %v453
    %v567 = vpop.f32.mrb[0].mxu0
    %v568 = vadd.f32 %v475, %v567
    %v569 = vpop.f32.mrb[0].mxu0
    %v570 = vpop.f32.mrb[0].mxu0
    %v571 = vpop.f32.mrb[0].mxu0
    %572 = vdwg.mxu0
    %573 = vst [vmem:[#allocation10] sm:$0xff] %v560
    %574 = vst [vmem:[#allocation10 + $0x8] sm:$0xff] %v563
    %575 = vst [vmem:[#allocation10 + $0x10] sm:$0xff] %v568
    // Predicated region
    $region46: #{tpu_custom_call.1} parent=1 // pred_check
      _
    $region47: #{tpu_custom_call.1} parent=1 // pred_check_branch
      %577 = sbr.rel (0) target = $region49
    $region48: #{tpu_custom_call.1} parent=1 // pred_region
      %s579 = ssub.s32 384, 384
      %580 = vsyncadd [#allocation4], %s579
      %s581 = sshll.u32 [#allocation10], 4
      %s582 = int_to_ptr.vmem [resolvable:$true] %s581
      %587 = dma.vmem_to_hbm [thread:$0]  %s582, 384, %s7, [#allocation4], 128, 128, 8
    $region49: #{tpu_custom_call.1} parent=1 // pred_fallthru
      _
    // Predicated region
    $region50: #{tpu_custom_call.1} parent=1 // pred_check
      _
    $region51: #{tpu_custom_call.1} parent=1 // pred_check_branch
      %589 = sbr.rel (0) target = $region53
    $region52: #{tpu_custom_call.1} parent=1 // pred_region
      %590 = dma.done [#allocation4], 384
    $region53: #{tpu_custom_call.1} parent=1 // pred_fallthru
      _
    %591 = vsyncpa [#allocation3], 1
    %592 = vsyncpa [#allocation6], 1
    %593 = vsyncpa [#allocation9], 1
    %594 = vsyncpa [#allocation4], 1

</llo_original>
